<compile_context>
chip_gen: v7x
topology: tpu7x:2x2x1
jax: 0.10.0
libtpu: 0.0.40
codegen_flags: <defaults>
</compile_context>

<pallas_src>
import functools

import jax
import jax.numpy as jnp
from jax import lax
from jax.experimental import pallas as pl
from jax.experimental.pallas import tpu as pltpu

LANES = 128
MAX_BLOCK_ROWS = 4096  # (4096,128) f32 = 2 MiB / input / pipeline buffer


def _pt_pow(pt, gamma):
    """pt ** gamma, using repeated multiplies for small integer gamma (keeps EUP free)."""
    g = float(gamma)
    if g == int(g) and 0 <= int(g) <= 4:
        k = int(g)
        if k == 0:
            return jnp.ones_like(pt)
        r = pt
        for _ in range(k - 1):
            r = r * pt
        return r
    return pt ** g  # non-integer gamma: exp(g*log(pt)) on the EUP


def _elem_loss_sum(p, t, alpha, gamma):
    """Plain-JAX focal-loss sum (exact two-log BCE); used for the tiny tail only."""
    p = p.astype(jnp.float32)
    t = t.astype(jnp.float32)
    pt = (1.0 - p) * t + p * (1.0 - t)
    fw = _pt_pow(pt, gamma) * (alpha * t + (1.0 - alpha) * (1.0 - t))
    bce = -(t * jnp.maximum(jnp.log(p), -100.0)
            + (1.0 - t) * jnp.maximum(jnp.log(1.0 - p), -100.0))
    return jnp.sum(bce * fw)


def _focal_loss_kernel(p_ref, t_ref, out_ref, *, alpha, gamma, rows_kernel,
                       block_rows, inner_steps, binary_targets, any_partial):
    i = pl.program_id(1)

    # Accumulate directly into the resident (8,128) output block (P3 pattern).
    @pl.when(i == 0)
    def _():
        out_ref[...] = jnp.zeros_like(out_ref)

    p = p_ref[...].astype(jnp.float32)
    t = t_ref[...].astype(jnp.float32)

    # pt = (1-p)*t + p*(1-t) == p + t - 2*p*t
    pt = p + t - 2.0 * (p * t)
    # alpha*t + (1-alpha)*(1-t) == (1-alpha) + (2*alpha-1)*t
    aw = (1.0 - alpha) + (2.0 * alpha - 1.0) * t
    fw = _pt_pow(pt, gamma) * aw

    if binary_targets:
        # For hard targets t in {0,1}: BCE = -max(log(1-pt), -100)  (single log / elem).
        bce = -jnp.maximum(jnp.log(1.0 - pt), -100.0)
    else:
        # Exact F.binary_cross_entropy (PyTorch clamps each log at -100).
        bce = -(t * jnp.maximum(jnp.log(p), -100.0)
                + (1.0 - t) * jnp.maximum(jnp.log(1.0 - p), -100.0))

    loss = bce * fw

    def _reduce(x):
        # Vreg-wise accumulation into an (8,128) slab: pure VPU adds, no cross-lane XLU.
        return x.reshape(block_rows // 8, 8, LANES).sum(axis=0)

    if any_partial:
        o = pl.program_id(0)
        blk = o * inner_steps + i                       # un-clamped virtual block index
        is_full = (blk + 1) * block_rows <= rows_kernel

        @pl.when(is_full)
        def _():
            out_ref[...] += _reduce(loss)

        @pl.when(jnp.logical_not(is_full))
        def _():
            # Only the overrunning (partial / phantom) blocks pay the mask.
            # Compare global ROW indices (no flat-element int32 overflow).
            rid = lax.broadcasted_iota(jnp.int32, (block_rows, LANES), 0) + blk * block_rows
            out_ref[...] += _reduce(jnp.where(rid < rows_kernel, loss, 0.0))
    else:
        out_ref[...] += _reduce(loss)


def focal_loss(pred, target, alpha=0.9, gamma=2.0, binary_targets=False):
    """(F.binary_cross_entropy(pred,target,'none') * focal_weight).sum().

    Set binary_targets=True only if every target is exactly 0 or 1 (uses the
    cheaper single-log BCE); the default matches PyTorch for soft targets too.
    """
    assert pred.shape == target.shape
    alpha = float(alpha)
    gamma = float(gamma)

    p_flat = pred.reshape(-1)   # free view, keeps input dtype (no host-side upcast)
    t_flat = target.reshape(-1)
    n = int(p_flat.shape[0])

    rows_all = n // LANES
    if rows_all >= MAX_BLOCK_ROWS:
        block_rows = MAX_BLOCK_ROWS            # multiple of 16 -> bf16-safe
        rows_kernel = rows_all
    else:
        rows_kernel = (rows_all // 8) * 8      # keep sublane-aligned full-dim block
        block_rows = rows_kernel

    elems_kernel = rows_kernel * LANES
    tail_loss = None
    if elems_kernel < n:
        # Tiny tail (< 8*128 + 128 elements): plain-JAX sum, no full-array pad/copy.
        tail_loss = _elem_loss_sum(p_flat[elems_kernel:], t_flat[elems_kernel:],
                                   alpha, gamma)
        if elems_kernel == 0:
            return tail_loss
        p_flat = p_flat[:elems_kernel]
        t_flat = t_flat[:elems_kernel]

    p2d = p_flat.reshape(rows_kernel, LANES)
    t2d = t_flat.reshape(rows_kernel, LANES)

    num_blocks = pl.cdiv(rows_kernel, block_rows)
    if num_blocks >= 2:
        outer = 2                              # always give both v7x TCs a partial slab
        inner = pl.cdiv(num_blocks, 2)
    else:
        outer, inner = 1, 1
    has_phantom = (outer * inner != num_blocks)
    any_partial = (rows_kernel % block_rows != 0) or has_phantom

    def in_map(o, i):
        blk = o * inner + i
        if has_phantom:
            blk = jnp.minimum(blk, num_blocks - 1)  # phantom block re-reads last block
        return (blk, 0)                             # (its contribution is masked to 0)

    kernel = functools.partial(
        _focal_loss_kernel,
        alpha=alpha, gamma=gamma, rows_kernel=int(rows_kernel),
        block_rows=int(block_rows), inner_steps=int(inner),
        binary_targets=bool(binary_targets), any_partial=bool(any_partial))

    partials = pl.pallas_call(
        kernel,
        out_shape=jax.ShapeDtypeStruct((outer, 8, LANES), jnp.float32),
        grid_spec=pltpu.PrefetchScalarGridSpec(
            num_scalar_prefetch=0,
            grid=(outer, inner),
            in_specs=[
                pl.BlockSpec((block_rows, LANES), in_map),
                pl.BlockSpec((block_rows, LANES), in_map),
            ],
            out_specs=pl.BlockSpec((None, 8, LANES), lambda o, i: (o, 0, 0)),
        ),
        compiler_params=pltpu.CompilerParams(
            # TODO(synk): try pltpu.CORE_PARALLEL on the outer axis on v7x and confirm
            # both TensorCores receive work in the trace.
            dimension_semantics=("parallel", "arbitrary"),
        ),
    )(p2d, t2d)

    total = jnp.sum(partials)   # tiny final reduce of the lane-dense partial slabs
    if tail_loss is not None:
        total = total + tail_loss
    return total


def _reference(pred, target, alpha=0.9, gamma=2.0):
    pred = pred.astype(jnp.float32)
    target = target.astype(jnp.float32)
    pt = (1.0 - pred) * target + pred * (1.0 - target)
    fw = pt ** gamma * (alpha * target + (1.0 - alpha) * (1.0 - target))
    bce = -(target * jnp.maximum(jnp.log(pred), -100.0)
            + (1.0 - target) * jnp.maximum(jnp.log(1.0 - pred), -100.0))
    return jnp.sum(bce * fw)


def _check(shape, key, binary_targets, rtol=1e-4):
    k1, k2 = jax.random.split(key)
    pred = jax.nn.sigmoid(jax.random.normal(k1, shape, jnp.float32))     # probs in (0,1)
    target = (jax.random.uniform(k2, shape) > 0.5).astype(jnp.float32)   # binary targets
    out = jax.block_until_ready(
        focal_loss(pred, target, alpha=0.9, gamma=2.0, binary_targets=binary_targets))
    ref = _reference(pred, target, alpha=0.9, gamma=2.0)
    assert jnp.allclose(out, ref, rtol=rtol, atol=1e-3), (shape, binary_targets, out, ref)


if __name__ == "__main__":
    key = jax.random.PRNGKey(0)
    k1, k2, k3 = jax.random.split(key, 3)

    # Primary small NCHW case (aligned: single block, no masking, no tail).
    _check((2, 4, 16, 16), k1, binary_targets=False)
    _check((2, 4, 16, 16), k1, binary_targets=True)

    # Non-128-aligned small case (exercises the plain-JAX tail path, no pad/copy of bulk).
    _check((3, 5, 17, 13), k2, binary_targets=False)

    # Larger unaligned case (exercises outer=2 partial slabs + masked partial block + tail).
    _check((2, 300, 1000), k3, binary_targets=True, rtol=2e-4)

    print("KERNEL_OK")
</pallas_src>

<mosaic_0001>
module attributes {stable_mosaic.version = 11 : i64} {
  func.func @_focal_loss_kernel(%arg0: i32, %arg1: i32, %arg2: memref<16x128xf32, #tpu.memory_space<vmem>>, %arg3: memref<16x128xf32, #tpu.memory_space<vmem>>, %arg4: memref<1x8x128xf32, #tpu.memory_space<vmem>>) attributes {dimension_semantics = [#tpu.dimension_semantics<parallel>, #tpu.dimension_semantics<arbitrary>], iteration_bounds = array<i64: 1, 1>, scalar_prefetch = 0 : i64, scratch_operands = 0 : i64, tpu.core_type = #tpu.core_type<tc>, window_params = [{transform_indices = @transform_0, window_bounds = array<i64: 16, 128>}, {transform_indices = @transform_1, window_bounds = array<i64: 16, 128>}, {transform_indices = @transform_2, window_bounds = array<i64: 1, 8, 128>}]} {
    %c0_i32 = arith.constant 0 : i32
    %0 = arith.cmpi eq, %arg1, %c0_i32 : i32
    %1 = arith.extui %0 : i1 to i32
    %c0_i32_0 = arith.constant 0 : i32
    %2 = arith.cmpi ne, %1, %c0_i32_0 : i32
    scf.if %2 {
      %cst_18 = arith.constant 0.000000e+00 : f32
      %40 = vector.broadcast %cst_18 : f32 to vector<8x128xf32>
      %c0_19 = arith.constant 0 : index
      %c0_20 = arith.constant 0 : index
      %c0_21 = arith.constant 0 : index
      %41 = vector.load %arg4[%c0_19, %c0_20, %c0_21] : memref<1x8x128xf32, #tpu.memory_space<vmem>>, vector<1x8x128xf32>
      %42 = vector.shape_cast %41 : vector<1x8x128xf32> to vector<8x128xf32>
      %43 = vector.shape_cast %40 : vector<8x128xf32> to vector<1x8x128xf32>
      tpu.vector_store %arg4[%c0_19, %c0_20, %c0_21], %43 {strides = array<i32>} : memref<1x8x128xf32, #tpu.memory_space<vmem>>, vector<1x8x128xf32>,
    } else {
    }
    %c0 = arith.constant 0 : index
    %c0_1 = arith.constant 0 : index
    %3 = vector.load %arg2[%c0, %c0_1] : memref<16x128xf32, #tpu.memory_space<vmem>>, vector<16x128xf32>
    %c0_2 = arith.constant 0 : index
    %c0_3 = arith.constant 0 : index
    %4 = vector.load %arg3[%c0_2, %c0_3] : memref<16x128xf32, #tpu.memory_space<vmem>>, vector<16x128xf32>
    %5 = arith.addf %3, %4 : vector<16x128xf32>
    %6 = arith.mulf %3, %4 : vector<16x128xf32>
    %cst = arith.constant 2.000000e+00 : f32
    %7 = vector.broadcast %cst : f32 to vector<16x128xf32>
    %8 = arith.mulf %7, %6 : vector<16x128xf32>
    %9 = arith.subf %5, %8 : vector<16x128xf32>
    %cst_4 = arith.constant 8.000000e-01 : f32
    %10 = vector.broadcast %cst_4 : f32 to vector<16x128xf32>
    %11 = arith.mulf %10, %4 : vector<16x128xf32>
    %cst_5 = arith.constant 1.000000e-01 : f32
    %12 = vector.broadcast %cst_5 : f32 to vector<16x128xf32>
    %13 = arith.addf %12, %11 : vector<16x128xf32>
    %14 = arith.mulf %9, %9 : vector<16x128xf32>
    %15 = arith.mulf %14, %13 : vector<16x128xf32>
    %16 = math.log %3 : vector<16x128xf32>
    %cst_6 = arith.constant -1.000000e+02 : f32
    %17 = vector.broadcast %cst_6 : f32 to vector<16x128xf32>
    %18 = arith.maximumf %16, %17 : vector<16x128xf32>
    %19 = arith.mulf %4, %18 : vector<16x128xf32>
    %cst_7 = arith.constant 1.000000e+00 : f32
    %20 = vector.broadcast %cst_7 : f32 to vector<16x128xf32>
    %21 = arith.subf %20, %4 : vector<16x128xf32>
    %cst_8 = arith.constant 1.000000e+00 : f32
    %22 = vector.broadcast %cst_8 : f32 to vector<16x128xf32>
    %23 = arith.subf %22, %3 : vector<16x128xf32>
    %24 = math.log %23 : vector<16x128xf32>
    %cst_9 = arith.constant -1.000000e+02 : f32
    %25 = vector.broadcast %cst_9 : f32 to vector<16x128xf32>
    %26 = arith.maximumf %24, %25 : vector<16x128xf32>
    %27 = arith.mulf %21, %26 : vector<16x128xf32>
    %28 = arith.addf %19, %27 : vector<16x128xf32>
    %cst_10 = arith.constant 0.000000e+00 : f32
    %29 = vector.broadcast %cst_10 : f32 to vector<16x128xf32>
    %30 = arith.subf %29, %28 : vector<16x128xf32>
    %31 = arith.mulf %30, %15 : vector<16x128xf32>
    %c0_11 = arith.constant 0 : index
    %c0_12 = arith.constant 0 : index
    %c0_13 = arith.constant 0 : index
    %32 = vector.load %arg4[%c0_11, %c0_12, %c0_13] : memref<1x8x128xf32, #tpu.memory_space<vmem>>, vector<1x8x128xf32>
    %33 = vector.shape_cast %32 : vector<1x8x128xf32> to vector<8x128xf32>
    %34 = vector.shape_cast %31 : vector<16x128xf32> to vector<2x8x128xf32>
    %cst_14 = arith.constant dense<0.000000e+00> : vector<8x128xf32>
    %35 = vector.multi_reduction <add>, %34, %cst_14 [0] : vector<2x8x128xf32> to vector<8x128xf32>
    %36 = arith.addf %33, %35 : vector<8x128xf32>
    %c0_15 = arith.constant 0 : index
    %c0_16 = arith.constant 0 : index
    %c0_17 = arith.constant 0 : index
    %37 = vector.load %arg4[%c0_15, %c0_16, %c0_17] : memref<1x8x128xf32, #tpu.memory_space<vmem>>, vector<1x8x128xf32>
    %38 = vector.shape_cast %37 : vector<1x8x128xf32> to vector<8x128xf32>
    %39 = vector.shape_cast %36 : vector<8x128xf32> to vector<1x8x128xf32>
    tpu.vector_store %arg4[%c0_15, %c0_16, %c0_17], %39 {strides = array<i32>} : memref<1x8x128xf32, #tpu.memory_space<vmem>>, vector<1x8x128xf32>,
    return
  }
  func.func @transform_0(%arg0: i32, %arg1: i32) -> (i32, i32) {
    %c1_i32 = arith.constant 1 : i32
    %0 = arith.muli %arg0, %c1_i32 : i32
    %1 = arith.addi %0, %arg1 : i32
    %c0_i32 = arith.constant 0 : i32
    %c0_i32_0 = arith.constant 0 : i32
    return %1, %c0_i32 : i32, i32
  }
  func.func @transform_1(%arg0: i32, %arg1: i32) -> (i32, i32) {
    %c1_i32 = arith.constant 1 : i32
    %0 = arith.muli %arg0, %c1_i32 : i32
    %1 = arith.addi %0, %arg1 : i32
    %c0_i32 = arith.constant 0 : i32
    %c0_i32_0 = arith.constant 0 : i32
    return %1, %c0_i32 : i32, i32
  }
  func.func @transform_2(%arg0: i32, %arg1: i32) -> (i32, i32, i32) {
    %c0_i32 = arith.constant 0 : i32
    %c0_i32_0 = arith.constant 0 : i32
    %c0_i32_1 = arith.constant 0 : i32
    return %arg0, %c0_i32, %c0_i32_0 : i32, i32, i32
  }
}

</mosaic_0001>

<llo_original>
// kernel: tpu_custom_call.1
$region0: #{tpu_custom_call.1}
  #allocation0 [shape = 'u32[]', space=smem, size = 0x4, offset = 0x4, fixed_abs, tag = 'smem constant byte address 0x4 - core index']
  #allocation1 [shape = 'u32[144,128]{1,0:T(1,128)}', space=vmem, size = 0x12000, scoped, tag = 'internal scratch']
  %s0 = inlined_call_operand.hbm [shape: f32[16,128], index: 0, kind: input, shape index: {}]
  %s1 = inlined_call_operand.hbm [shape: f32[16,128], index: 1, kind: input, shape index: {}]
  %s2 = inlined_call_operand.hbm [shape: f32[1,8,128], index: 2, kind: output, shape index: {}]
  %s3 = sld [smem:[#allocation0]]
  $region30: #{tpu_custom_call.1} parent=0
    _
  %s5 = ssub.s32 1, %s3
  %s6 = scalar_select 0, %s5, %s3
  $region1: #{tpu_custom_call.1} parent=0
    #allocation2 [shape = 'u8[8192]{0}', space=vmem, size = 0x2000, scoped, tag = 'input window, operand 0, single buffered']
    #allocation3 [shape = 's32[1]{0}', space=sflag, size = 0x4, scoped, tag = 'scoped memory for tpu_custom_call.1']
    #allocation4 [shape = 's32[1]{0}', space=sflag, size = 0x4, scoped, tag = 'scoped memory for tpu_custom_call.1']
    #allocation5 [shape = 'u8[8192]{0}', space=vmem, size = 0x2000, scoped, tag = 'input window, operand 1, single buffered']
    #allocation6 [shape = 's32[1]{0}', space=sflag, size = 0x4, scoped, tag = 'scoped memory for tpu_custom_call.1']
    #allocation7 [shape = 'u8[4096]{0}', space=vmem, size = 0x1000, scoped, tag = 'output window, operand 0, single buffered']
    %7 = vsyncpa [#allocation3], 0
    %8 = vsyncpa [#allocation6], 0
    %9 = vsyncpa [#allocation4], 0
    // Predicated region
    $region2: #{tpu_custom_call.1} parent=1 // pred_check
      _
    $region3: #{tpu_custom_call.1} parent=1 // pred_check_branch
      %11 = sbr.rel (0) target = $region5
    $region4: #{tpu_custom_call.1} parent=1 // pred_region
      %s12 = sadd.s32 0, 0
      %s13 = smul.u32 2, %s12
      %s15 = ssub.s32 256, 256
      %16 = vsyncadd [#allocation3], %s15
      %s17 = smul.addr %s13, 128
      %s18 = scalar_lea.hbm %s0, %s17
      %s19 = sshll.u32 [#allocation2], 4
      %s20 = int_to_ptr.vmem [resolvable:$true] %s19
      %25 = dma.hbm_to_vmem [thread:$0]  %s18, 256, %s20, [#allocation3], 128, 128, 8
    $region5: #{tpu_custom_call.1} parent=1 // pred_fallthru
      _
    // Predicated region
    $region6: #{tpu_custom_call.1} parent=1 // pred_check
      _
    $region7: #{tpu_custom_call.1} parent=1 // pred_check_branch
      %27 = sbr.rel (0) target = $region9
    $region8: #{tpu_custom_call.1} parent=1 // pred_region
      %s28 = sadd.s32 0, 0
      %s29 = smul.u32 2, %s28
      %s31 = ssub.s32 256, 256
      %32 = vsyncadd [#allocation6], %s31
      %s33 = smul.addr %s29, 128
      %s34 = scalar_lea.hbm %s1, %s33
      %s35 = sshll.u32 [#allocation5], 4
      %s36 = int_to_ptr.vmem [resolvable:$true] %s35
      %41 = dma.hbm_to_vmem [thread:$0]  %s34, 256, %s36, [#allocation6], 128, 128, 8
    $region9: #{tpu_custom_call.1} parent=1 // pred_fallthru
      _
    // Predicated region
    $region10: #{tpu_custom_call.1} parent=1 // pred_check
      _
    $region11: #{tpu_custom_call.1} parent=1 // pred_check_branch
      %43 = sbr.rel (0) target = $region13
    $region12: #{tpu_custom_call.1} parent=1 // pred_region
      %44 = dma.done [#allocation3], 256
    $region13: #{tpu_custom_call.1} parent=1 // pred_fallthru
      _
    // Predicated region
    $region14: #{tpu_custom_call.1} parent=1 // pred_check
      _
    $region15: #{tpu_custom_call.1} parent=1 // pred_check_branch
      %46 = sbr.rel (0) target = $region17
    $region16: #{tpu_custom_call.1} parent=1 // pred_region
      %47 = dma.done [#allocation6], 256
    $region17: #{tpu_custom_call.1} parent=1 // pred_fallthru
      _
    %s48 = sadd.s32 0, 0
    %s49 = smul.u32 2, %s48
    %s50 = sadd.s32 0, 0
    %s51 = smul.u32 2, %s50
    %p52 = scmp.eq.s32.totalorder 0, 0
    // Predicated region
    $region18: #{tpu_custom_call.1} parent=1 // pred_check
      %p53 = pneg %p52
    $region19: #{tpu_custom_call.1} parent=1 // pred_check_branch
      %55 = sbr.rel (%p53) target = $region21
    $region20: #{tpu_custom_call.1} parent=1 // pred_region
      %56 = vst [vmem:[#allocation7] sm:$0xff] 0.0
    $region21: #{tpu_custom_call.1} parent=1 // pred_fallthru
      _
    %v57 = vld [vmem:[#allocation2] sm:$0xff]
    %v58 = vld [vmem:[#allocation2 + $0x8] sm:$0xff]
    %v59 = vld [vmem:[#allocation5] sm:$0xff]
    %v60 = vld [vmem:[#allocation5 + $0x8] sm:$0xff]
    %v61 = vadd.f32 %v57, %v59
    %v62 = vadd.f32 %v58, %v60
    %v63 = vmul.f32 %v57, %v59
    %v64 = vmul.f32 %v58, %v60
    %v65 = vmul.f32 %v63, 2.0
    %v66 = vmul.f32 %v64, 2.0
    %v67 = vsub.f32 %v61, %v65
    %v68 = vsub.f32 %v62, %v66
    %v69 = vmul.f32 %v59, 0.8
    %v70 = vmul.f32 %v60, 0.8
    %v71 = vadd.f32 %v69, 0.1
    %v72 = vadd.f32 %v70, 0.1
    %v73 = vmul.f32 %v67, %v67
    %v74 = vmul.f32 %v68, %v68
    %v75 = vmul.f32 %v73, %v71
    %v76 = vmul.f32 %v74, %v72
    %v77 = vlog2.pop %v57
    %v78 = vmul.f32 %v77, 0.6931472
    %v79 = vlog2.pop %v58
    %v80 = vmul.f32 %v79, 0.6931472
    %v81 = vmax.f32 %v78, -100.0
    %v82 = vmax.f32 %v80, -100.0
    %v83 = vmul.f32 %v59, %v81
    %v84 = vmul.f32 %v60, %v82
    %v85 = vsub.f32 1.0, %v59
    %v86 = vsub.f32 1.0, %v60
    %v87 = vsub.f32 1.0, %v57
    %v88 = vsub.f32 1.0, %v58
    %v89 = vlog2.pop %v87
    %v90 = vmul.f32 %v89, 0.6931472
    %v91 = vlog2.pop %v88
    %v92 = vmul.f32 %v91, 0.6931472
    %v93 = vmax.f32 %v90, -100.0
    %v94 = vmax.f32 %v92, -100.0
    %v95 = vmul.f32 %v85, %v93
    %v96 = vmul.f32 %v86, %v94
    %v97 = vadd.f32 %v83, %v95
    %v98 = vadd.f32 %v84, %v96
    %v99 = vsub.f32 0.0, %v97
    %v100 = vsub.f32 0.0, %v98
    %v101 = vmul.f32 %v99, %v75
    %v102 = vmul.f32 %v100, %v76
    %v103 = vld [vmem:[#allocation7] sm:$0xff]
    %v104 = vadd.f32 %v101, %v102
    %v105 = vadd.f32 %v103, %v104
    %106 = vst [vmem:[#allocation7] sm:$0xff] %v105
    // Predicated region
    $region22: #{tpu_custom_call.1} parent=1 // pred_check
      _
    $region23: #{tpu_custom_call.1} parent=1 // pred_check_branch
      %108 = sbr.rel (0) target = $region25
    $region24: #{tpu_custom_call.1} parent=1 // pred_region
      %s110 = ssub.s32 128, 128
      %111 = vsyncadd [#allocation4], %s110
      %s113 = sshll.u32 [#allocation7], 4
      %s114 = int_to_ptr.vmem [resolvable:$true] %s113
      %116 = dma.vmem_to_hbm [thread:$0]  %s114, 128, %s2, [#allocation4]
    $region25: #{tpu_custom_call.1} parent=1 // pred_fallthru
      _
    // Predicated region
    $region26: #{tpu_custom_call.1} parent=1 // pred_check
      _
    $region27: #{tpu_custom_call.1} parent=1 // pred_check_branch
      %118 = sbr.rel (0) target = $region29
    $region28: #{tpu_custom_call.1} parent=1 // pred_region
      %119 = dma.done [#allocation4], 128
    $region29: #{tpu_custom_call.1} parent=1 // pred_fallthru
      _
    %120 = vsyncpa [#allocation3], 1
    %121 = vsyncpa [#allocation6], 1
    %122 = vsyncpa [#allocation4], 1

</llo_original>
